<compile_context>
chip_gen: v7x
topology: tpu7x:2x2x1
jax: 0.10.0
libtpu: 0.0.40
codegen_flags: <defaults>
</compile_context>

<pallas_src>
import functools

import jax
import jax.numpy as jnp
from jax.experimental import pallas as pl
from jax.experimental.pallas import tpu as pltpu


# ---------------------------------------------------------------------------
# In-kernel math helpers (VPU only: mul/add/min/max/div; exp only in softmax).
# ---------------------------------------------------------------------------
# Eigen / XLA float32 erf rational approximation (the same polynomial XLA uses
# to lower lax.erf for f32), so the kernel matches jax.nn.gelu(approximate=
# False) in the reference to ~1 ulp.  Mosaic has no native erf lowering.
_ERF_ALPHA = (-2.72614225801306e-10, 2.77068142495902e-08,
              -2.10102402082508e-06, -5.69250639462346e-05,
              -7.34990630326855e-04, -2.95459980854025e-03,
              -1.60960333262415e-02)
_ERF_BETA = (-1.45660718464996e-05, -2.13374055278905e-04,
             -1.68282697438203e-03, -7.37332916720468e-03,
             -1.42647390514189e-02)


def _erf(x):
    x = jnp.clip(x, -4.0, 4.0)
    x2 = x * x
    p = jnp.float32(_ERF_ALPHA[0])
    for c in _ERF_ALPHA[1:]:
        p = p * x2 + jnp.float32(c)
    q = jnp.float32(_ERF_BETA[0])
    for c in _ERF_BETA[1:]:
        q = q * x2 + jnp.float32(c)
    return (x * p) / q            # exact division (lowered by Mosaic)


def _feature_map(x):
    # gelu(x) + 1 with the exact-erf GELU formulation (F.gelu default).
    inv_sqrt2 = jnp.float32(0.7071067811865476)
    return 0.5 * x * (1.0 + _erf(x * inv_sqrt2)) + 1.0


def _softmax_times_v_plus_q(energy, v, q):
    # Numerically stable softmax over the reduction (sublane) axis, multiply
    # by the (broadcast) values and fuse the residual add with the query.
    m = jnp.max(energy, axis=0, keepdims=True)
    e = jnp.exp(energy - m)
    inv_denom = 1.0 / jnp.sum(e, axis=0, keepdims=True)     # exact reciprocal
    return (e * inv_denom) * v + q


# ---------------------------------------------------------------------------
# Pallas kernels (2-D slabs: axis 0 = sequence/reduction, axis 1 = B*E lanes).
# ---------------------------------------------------------------------------
def _self_attn_kernel(x_ref, ctx_ref, o_ref, *, inv_scale, query_is_rep):
    x = x_ref[...].astype(jnp.float32)                       # (L, TC)
    ctx = ctx_ref[...].astype(jnp.float32)                   # (L, TC)
    # Fused contextualise: rep = global_dot_score(x, ctx).
    rep = jnp.sum(x * ctx, axis=0, keepdims=True) * x        # (L, TC)
    q = rep if query_is_rep else x                           # layer-0 vs rest
    fmq = _feature_map(q)
    fmk = _feature_map(ctx)
    score = jnp.sum(fmq * fmk, axis=0, keepdims=True) * inv_scale
    energy = score * fmq                                     # (L, TC)
    out = _softmax_times_v_plus_q(energy, rep, q)            # residual fused
    o_ref[...] = out.astype(o_ref.dtype)


def _cross_attn_kernel(q_ref, fmk_ref, v_ref, o_ref, *, inv_scale):
    q = q_ref[...].astype(jnp.float32)                       # (L, TC)
    fmq = _feature_map(q)
    fmk = fmk_ref[...].astype(jnp.float32)                   # (1, TC), pre-fm'd
    v = v_ref[...].astype(jnp.float32)                       # (1, TC)
    score = jnp.sum(fmq * fmk, axis=0, keepdims=True) * inv_scale
    energy = score * fmq
    out = _softmax_times_v_plus_q(energy, v, q)              # residual fused
    o_ref[...] = out.astype(o_ref.dtype)


# ---------------------------------------------------------------------------
# Wrappers: lane padding, tiling and pallas_call plumbing.
# ---------------------------------------------------------------------------
def _round_up(n, m):
    return ((n + m - 1) // m) * m


def _pad_lanes(a, cp):
    c = a.shape[-1]
    return a if c == cp else jnp.pad(a, ((0, 0), (0, cp - c)))


def _pick_lane_tile(n_rows, n_cols):
    """Lane tile for an (n_rows, n_cols) slab; n_cols is a multiple of 128.

    Keeps one f32 slab under ~2 MiB (double-buffered in/out + f32 temps fit the
    32 MiB default scoped VMEM; safe on v7x's 64 MiB physical VMEM) and, when
    the lane axis allows it, guarantees >= 2 grid steps so the 'parallel' axis
    can shard across v7x's 2 TensorCores.  Every tile divides n_cols so all
    blocks stay lane-dense (no masked partial stores)."""
    budget_units = max(1, ((2 * 1024 * 1024) // 4) // max(n_rows, 1) // 128)
    cap = min(16, budget_units)                    # <= 2048 lanes per tile
    m = n_cols // 128
    if m >= 2:
        cap = min(cap, max(1, m // 2))             # >= 2 steps for v7x 2 TCs
    k = 1
    for cand in range(min(cap, m), 0, -1):
        if m % cand == 0:
            k = cand
            break
    return 128 * k


_COMPILER_PARAMS = pltpu.CompilerParams(
    dimension_semantics=("parallel",),
    vmem_limit_bytes=48 * 1024 * 1024,
)


def fused_self_attention(x, ctx, *, embed_size, query_is_rep):
    """softmax_seq(sum_seq(fm(q)*fm(ctx)) * fm(q)/sqrt(E)) * rep + q,
    with rep = global_dot_score(x, ctx) computed in-kernel and
    q = rep (first layer) or x (later layers).  x, ctx: (L, B, E)."""
    L, B, E = x.shape
    C = B * E
    Cp = _round_up(C, 128)                         # lane-dense loads/stores
    xf = _pad_lanes(x.reshape(L, C), Cp)
    cf = _pad_lanes(ctx.reshape(L, C), Cp)
    tc = _pick_lane_tile(L, Cp)
    n = L * Cp
    itemsize = jnp.dtype(x.dtype).itemsize
    cost = pl.CostEstimate(flops=70 * n, transcendentals=n,
                           bytes_accessed=3 * n * itemsize)
    kernel = functools.partial(
        _self_attn_kernel,
        inv_scale=1.0 / (float(embed_size) ** 0.5),
        query_is_rep=query_is_rep)
    out = pl.pallas_call(
        kernel,
        out_shape=jax.ShapeDtypeStruct((L, Cp), x.dtype),
        grid=(Cp // tc,),
        in_specs=[pl.BlockSpec((L, tc), lambda j: (0, j)),
                  pl.BlockSpec((L, tc), lambda j: (0, j))],
        out_specs=pl.BlockSpec((L, tc), lambda j: (0, j)),
        compiler_params=_COMPILER_PARAMS,
        cost_estimate=cost,
    )(xf, cf)
    return out[:, :C].reshape(L, B, E)


def fused_cross_attention(q, fmk, v, *, embed_size):
    """softmax_seq(sum_seq(fm(q)*fmk) * fm(q)/sqrt(E)) * v + q.
    q: (L, B, E); fmk, v: (1, B, E) broadcast over the sequence axis
    (fmk is already feature-mapped — layer-invariant, computed once in XLA)."""
    L, B, E = q.shape
    C = B * E
    Cp = _round_up(C, 128)
    qf = _pad_lanes(q.reshape(L, C), Cp)
    kf = _pad_lanes(fmk.reshape(1, C), Cp)
    vf = _pad_lanes(v.reshape(1, C), Cp)
    tc = _pick_lane_tile(L, Cp)
    n = L * Cp
    itemsize = jnp.dtype(q.dtype).itemsize
    cost = pl.CostEstimate(flops=45 * n + 4 * Cp, transcendentals=n,
                           bytes_accessed=(2 * n + 2 * Cp) * itemsize)
    kernel = functools.partial(
        _cross_attn_kernel, inv_scale=1.0 / (float(embed_size) ** 0.5))
    out = pl.pallas_call(
        kernel,
        out_shape=jax.ShapeDtypeStruct((L, Cp), q.dtype),
        grid=(Cp // tc,),
        in_specs=[pl.BlockSpec((L, tc), lambda j: (0, j)),
                  pl.BlockSpec((1, tc), lambda j: (0, j)),
                  pl.BlockSpec((1, tc), lambda j: (0, j))],
        out_specs=pl.BlockSpec((L, tc), lambda j: (0, j)),
        compiler_params=_COMPILER_PARAMS,
        cost_estimate=cost,
    )(qf, kf, vf)
    return out[:, :C].reshape(L, B, E)


# ---------------------------------------------------------------------------
# Decoder forward (inference): XLA glue around the Pallas attention kernels.
# ---------------------------------------------------------------------------
def _layer_norm(x, w, b, eps=1e-5):
    mu = jnp.mean(x, axis=-1, keepdims=True)
    var = jnp.mean(jnp.square(x - mu), axis=-1, keepdims=True)
    return (x - mu) / jnp.sqrt(var + eps) * w + b


def decoder_forward(params, tokens, enc_out, enc_ctx):
    """Decoder.forward (dropout = identity, masks unused, pool='cumsum')."""
    emb = jnp.take(params["embedding"], tokens, axis=0)        # (B, L, E)
    B, L, E = emb.shape

    # Time-major layout: the (L, B, E) -> (L, B*E) reshape around each kernel
    # call is free (reduction axis L on sublanes, lane-dense B*E last axis).
    x = jnp.transpose(emb, (1, 0, 2))                          # (L, B, E)

    # Cross-attention key/value are layer-invariant: feature-map k2 once here.
    k2 = jnp.transpose(enc_ctx[:, -1:, :], (1, 0, 2))          # (1, B, E)
    fmk2 = jax.nn.gelu(k2, approximate=False) + 1.0
    v2 = jnp.transpose(jnp.sum(enc_out, axis=1, keepdims=True), (1, 0, 2))

    for i, lp in enumerate(params["layers"]):
        # contextualise: the first layer consumes the embedding's context (and
        # its query IS rep); later layers consume the previous layer's output.
        ctx = jnp.cumsum(x, axis=0)                            # torch.cumsum(dim=1)
        a1 = fused_self_attention(x, ctx, embed_size=E,
                                  query_is_rep=(i == 0))       # attn*rep + query
        q = _layer_norm(a1, lp["norm_w"], lp["norm_b"])        # dropout == identity
        a2 = fused_cross_attention(q, fmk2, v2, embed_size=E)  # attn*v2 + q
        x = _layer_norm(a2, lp["norm1_w"], lp["norm1_b"])

    return jnp.transpose(x, (1, 0, 2))                         # back to (B, L, E)


# ---------------------------------------------------------------------------
# Pure-JAX reference (straight transcription of the PyTorch module).
# ---------------------------------------------------------------------------
def _reference_decoder(params, tokens, enc_out, enc_ctx):
    E = params["embedding"].shape[1]
    scaling = float(E) ** 0.5
    fm = lambda t: jax.nn.gelu(t, approximate=False) + 1.0

    def gds(q, k):
        return jnp.sum(q * k, axis=1, keepdims=True) * q

    def attention(q, k, v):
        energy = gds(fm(q), fm(k)) / scaling
        return jax.nn.softmax(energy, axis=1) * v

    def layer_norm(y, w, b, eps=1e-5):
        mu = jnp.mean(y, axis=-1, keepdims=True)
        var = jnp.mean((y - mu) ** 2, axis=-1, keepdims=True)
        return (y - mu) / jnp.sqrt(var + eps) * w + b

    x = jnp.take(params["embedding"], tokens, axis=0)          # (B, L, E)
    ctx = jnp.cumsum(x, axis=1)
    x = gds(x, ctx)
    rep = x
    k2 = enc_ctx[:, -1:, :]
    v2 = jnp.sum(enc_out, axis=1, keepdims=True)
    n = len(params["layers"])
    for i, lp in enumerate(params["layers"]):
        a1 = attention(x, ctx, rep)
        q = layer_norm(a1 + x, lp["norm_w"], lp["norm_b"])
        a2 = attention(q, k2, v2)
        x = layer_norm(a2 + q, lp["norm1_w"], lp["norm1_b"])
        if i + 1 < n:
            ctx = jnp.cumsum(x, axis=1)
            rep = gds(x, ctx)
    return x


if __name__ == "__main__":
    VOCAB, E, NUM_LAYERS = 50, 32, 2
    B, L, S = 2, 8, 6   # batch=2, trg seq=8, src seq=6, embed_size=32

    key = jax.random.PRNGKey(0)
    k_emb, k_tok, k_eo, k_ec = jax.random.split(key, 4)

    params = {
        "embedding": jax.random.normal(k_emb, (VOCAB, E), dtype=jnp.float32),
        "layers": [
            {   # nn.LayerNorm defaults: weight=1, bias=0
                "norm_w": jnp.ones((E,), jnp.float32),
                "norm_b": jnp.zeros((E,), jnp.float32),
                "norm1_w": jnp.ones((E,), jnp.float32),
                "norm1_b": jnp.zeros((E,), jnp.float32),
            }
            for _ in range(NUM_LAYERS)
        ],
    }
    tokens = jax.random.randint(k_tok, (B, L), 0, VOCAB, dtype=jnp.int32)
    enc_out = jax.random.normal(k_eo, (B, S, E), dtype=jnp.float32)
    enc_ctx = jax.random.normal(k_ec, (B, S, E), dtype=jnp.float32)

    out = jax.jit(decoder_forward)(params, tokens, enc_out, enc_ctx)
    out = jax.block_until_ready(out)

    ref = _reference_decoder(params, tokens, enc_out, enc_ctx)
    assert out.shape == (B, L, E), out.shape
    max_err = float(jnp.max(jnp.abs(out - ref)))
    # The kernel's erf is the same f32 rational XLA lowers lax.erf to and all
    # reciprocals are exact, so the only mismatch is f32 op-ordering noise.
    assert max_err < 5e-3, f"max abs error {max_err}"

    print("KERNEL_OK")
</pallas_src>

<mosaic_0001>
module attributes {stable_mosaic.version = 11 : i64} {
  func.func @_cross_attn_kernel(%arg0: i32, %arg1: memref<8x128xf32, #tpu.memory_space<vmem>>, %arg2: memref<1x128xf32, #tpu.memory_space<vmem>>, %arg3: memref<1x128xf32, #tpu.memory_space<vmem>>, %arg4: memref<8x128xf32, #tpu.memory_space<vmem>>) attributes {dimension_semantics = [#tpu.dimension_semantics<parallel>], iteration_bounds = array<i64: 1>, scalar_prefetch = 0 : i64, scratch_operands = 0 : i64, tpu.core_type = #tpu.core_type<tc>, window_params = [{transform_indices = @transform_0, window_bounds = array<i64: 8, 128>}, {transform_indices = @transform_1, window_bounds = array<i64: 1, 128>}, {transform_indices = @transform_2, window_bounds = array<i64: 1, 128>}, {transform_indices = @transform_3, window_bounds = array<i64: 8, 128>}]} {
    %c0 = arith.constant 0 : index
    %c0_0 = arith.constant 0 : index
    %0 = vector.load %arg1[%c0, %c0_0] : memref<8x128xf32, #tpu.memory_space<vmem>>, vector<8x128xf32>
    %cst = arith.constant 5.000000e-01 : f32
    %1 = vector.broadcast %cst : f32 to vector<8x128xf32>
    %2 = arith.mulf %1, %0 : vector<8x128xf32>
    %cst_1 = arith.constant 0.707106769 : f32
    %3 = vector.broadcast %cst_1 : f32 to vector<8x128xf32>
    %4 = arith.mulf %0, %3 : vector<8x128xf32>
    %cst_2 = arith.constant -4.000000e+00 : f32
    %cst_3 = arith.constant 4.000000e+00 : f32
    %5 = vector.broadcast %cst_2 : f32 to vector<8x128xf32>
    %6 = arith.maximumf %5, %4 : vector<8x128xf32>
    %7 = vector.broadcast %cst_3 : f32 to vector<8x128xf32>
    %8 = arith.minimumf %7, %6 : vector<8x128xf32>
    %9 = arith.mulf %8, %8 : vector<8x128xf32>
    %cst_4 = arith.constant -2.72614237E-10 : f32
    %10 = vector.broadcast %cst_4 : f32 to vector<8x128xf32>
    %11 = arith.mulf %10, %9 : vector<8x128xf32>
    %cst_5 = arith.constant 2.77068146E-8 : f32
    %12 = vector.broadcast %cst_5 : f32 to vector<8x128xf32>
    %13 = arith.addf %11, %12 : vector<8x128xf32>
    %14 = arith.mulf %13, %9 : vector<8x128xf32>
    %cst_6 = arith.constant -2.10102394E-6 : f32
    %15 = vector.broadcast %cst_6 : f32 to vector<8x128xf32>
    %16 = arith.addf %14, %15 : vector<8x128xf32>
    %17 = arith.mulf %16, %9 : vector<8x128xf32>
    %cst_7 = arith.constant -5.69250624E-5 : f32
    %18 = vector.broadcast %cst_7 : f32 to vector<8x128xf32>
    %19 = arith.addf %17, %18 : vector<8x128xf32>
    %20 = arith.mulf %19, %9 : vector<8x128xf32>
    %cst_8 = arith.constant -7.34990637E-4 : f32
    %21 = vector.broadcast %cst_8 : f32 to vector<8x128xf32>
    %22 = arith.addf %20, %21 : vector<8x128xf32>
    %23 = arith.mulf %22, %9 : vector<8x128xf32>
    %cst_9 = arith.constant -2.954600e-03 : f32
    %24 = vector.broadcast %cst_9 : f32 to vector<8x128xf32>
    %25 = arith.addf %23, %24 : vector<8x128xf32>
    %26 = arith.mulf %25, %9 : vector<8x128xf32>
    %cst_10 = arith.constant -0.0160960332 : f32
    %27 = vector.broadcast %cst_10 : f32 to vector<8x128xf32>
    %28 = arith.addf %26, %27 : vector<8x128xf32>
    %cst_11 = arith.constant -1.45660715E-5 : f32
    %29 = vector.broadcast %cst_11 : f32 to vector<8x128xf32>
    %30 = arith.mulf %29, %9 : vector<8x128xf32>
    %cst_12 = arith.constant -2.13374049E-4 : f32
    %31 = vector.broadcast %cst_12 : f32 to vector<8x128xf32>
    %32 = arith.addf %30, %31 : vector<8x128xf32>
    %33 = arith.mulf %32, %9 : vector<8x128xf32>
    %cst_13 = arith.constant -0.00168282702 : f32
    %34 = vector.broadcast %cst_13 : f32 to vector<8x128xf32>
    %35 = arith.addf %33, %34 : vector<8x128xf32>
    %36 = arith.mulf %35, %9 : vector<8x128xf32>
    %cst_14 = arith.constant -0.00737332925 : f32
    %37 = vector.broadcast %cst_14 : f32 to vector<8x128xf32>
    %38 = arith.addf %36, %37 : vector<8x128xf32>
    %39 = arith.mulf %38, %9 : vector<8x128xf32>
    %cst_15 = arith.constant -0.0142647391 : f32
    %40 = vector.broadcast %cst_15 : f32 to vector<8x128xf32>
    %41 = arith.addf %39, %40 : vector<8x128xf32>
    %42 = arith.mulf %8, %28 : vector<8x128xf32>
    %43 = arith.divf %42, %41 : vector<8x128xf32>
    %cst_16 = arith.constant 1.000000e+00 : f32
    %44 = vector.broadcast %cst_16 : f32 to vector<8x128xf32>
    %45 = arith.addf %44, %43 : vector<8x128xf32>
    %46 = arith.mulf %2, %45 : vector<8x128xf32>
    %cst_17 = arith.constant 1.000000e+00 : f32
    %47 = vector.broadcast %cst_17 : f32 to vector<8x128xf32>
    %48 = arith.addf %46, %47 : vector<8x128xf32>
    %c0_18 = arith.constant 0 : index
    %c0_19 = arith.constant 0 : index
    %49 = vector.load %arg2[%c0_18, %c0_19] : memref<1x128xf32, #tpu.memory_space<vmem>>, vector<1x128xf32>
    %c0_20 = arith.constant 0 : index
    %c0_21 = arith.constant 0 : index
    %50 = vector.load %arg3[%c0_20, %c0_21] : memref<1x128xf32, #tpu.memory_space<vmem>>, vector<1x128xf32>
    %51 = vector.broadcast %49 : vector<1x128xf32> to vector<8x128xf32>
    %52 = arith.mulf %48, %51 : vector<8x128xf32>
    %cst_22 = arith.constant dense<0.000000e+00> : vector<128xf32>
    %53 = vector.multi_reduction <add>, %52, %cst_22 [0] : vector<8x128xf32> to vector<128xf32>
    %54 = vector.shape_cast %53 : vector<128xf32> to vector<1x128xf32>
    %cst_23 = arith.constant 0.176776692 : f32
    %55 = vector.broadcast %cst_23 : f32 to vector<1x128xf32>
    %56 = arith.mulf %54, %55 : vector<1x128xf32>
    %57 = vector.broadcast %56 : vector<1x128xf32> to vector<8x128xf32>
    %58 = arith.mulf %57, %48 : vector<8x128xf32>
    %cst_24 = arith.constant dense<0xFF800000> : vector<128xf32>
    %59 = vector.multi_reduction <maximumf>, %58, %cst_24 [0] : vector<8x128xf32> to vector<128xf32>
    %60 = vector.shape_cast %59 : vector<128xf32> to vector<1x128xf32>
    %61 = vector.broadcast %60 : vector<1x128xf32> to vector<8x128xf32>
    %62 = arith.subf %58, %61 : vector<8x128xf32>
    %63 = math.exp %62 : vector<8x128xf32>
    %cst_25 = arith.constant dense<0.000000e+00> : vector<128xf32>
    %64 = vector.multi_reduction <add>, %63, %cst_25 [0] : vector<8x128xf32> to vector<128xf32>
    %65 = vector.shape_cast %64 : vector<128xf32> to vector<1x128xf32>
    %cst_26 = arith.constant 1.000000e+00 : f32
    %66 = vector.broadcast %cst_26 : f32 to vector<1x128xf32>
    %67 = arith.divf %66, %65 : vector<1x128xf32>
    %68 = vector.broadcast %67 : vector<1x128xf32> to vector<8x128xf32>
    %69 = arith.mulf %63, %68 : vector<8x128xf32>
    %70 = vector.broadcast %50 : vector<1x128xf32> to vector<8x128xf32>
    %71 = arith.mulf %69, %70 : vector<8x128xf32>
    %72 = arith.addf %71, %0 : vector<8x128xf32>
    %c0_27 = arith.constant 0 : index
    %c0_28 = arith.constant 0 : index
    %73 = vector.load %arg4[%c0_27, %c0_28] : memref<8x128xf32, #tpu.memory_space<vmem>>, vector<8x128xf32>
    tpu.vector_store %arg4[%c0_27, %c0_28], %72 {strides = array<i32>} : memref<8x128xf32, #tpu.memory_space<vmem>>, vector<8x128xf32>,
    return
  }
  func.func @transform_0(%arg0: i32) -> (i32, i32) {
    %c0_i32 = arith.constant 0 : i32
    %c0_i32_0 = arith.constant 0 : i32
    return %c0_i32, %arg0 : i32, i32
  }
  func.func @transform_1(%arg0: i32) -> (i32, i32) {
    %c0_i32 = arith.constant 0 : i32
    %c0_i32_0 = arith.constant 0 : i32
    return %c0_i32, %arg0 : i32, i32
  }
  func.func @transform_2(%arg0: i32) -> (i32, i32) {
    %c0_i32 = arith.constant 0 : i32
    %c0_i32_0 = arith.constant 0 : i32
    return %c0_i32, %arg0 : i32, i32
  }
  func.func @transform_3(%arg0: i32) -> (i32, i32) {
    %c0_i32 = arith.constant 0 : i32
    %c0_i32_0 = arith.constant 0 : i32
    return %c0_i32, %arg0 : i32, i32
  }
}

module attributes {stable_mosaic.version = 11 : i64} {
  func.func @_self_attn_kernel(%arg0: i32, %arg1: memref<8x128xf32, #tpu.memory_space<vmem>>, %arg2: memref<8x128xf32, #tpu.memory_space<vmem>>, %arg3: memref<8x128xf32, #tpu.memory_space<vmem>>) attributes {dimension_semantics = [#tpu.dimension_semantics<parallel>], iteration_bounds = array<i64: 1>, scalar_prefetch = 0 : i64, scratch_operands = 0 : i64, tpu.core_type = #tpu.core_type<tc>, window_params = [{transform_indices = @transform_0, window_bounds = array<i64: 8, 128>}, {transform_indices = @transform_1, window_bounds = array<i64: 8, 128>}, {transform_indices = @transform_2, window_bounds = array<i64: 8, 128>}]} {
    %c0 = arith.constant 0 : index
    %c0_0 = arith.constant 0 : index
    %0 = vector.load %arg1[%c0, %c0_0] : memref<8x128xf32, #tpu.memory_space<vmem>>, vector<8x128xf32>
    %c0_1 = arith.constant 0 : index
    %c0_2 = arith.constant 0 : index
    %1 = vector.load %arg2[%c0_1, %c0_2] : memref<8x128xf32, #tpu.memory_space<vmem>>, vector<8x128xf32>
    %2 = arith.mulf %0, %1 : vector<8x128xf32>
    %cst = arith.constant dense<0.000000e+00> : vector<128xf32>
    %3 = vector.multi_reduction <add>, %2, %cst [0] : vector<8x128xf32> to vector<128xf32>
    %4 = vector.shape_cast %3 : vector<128xf32> to vector<1x128xf32>
    %5 = vector.broadcast %4 : vector<1x128xf32> to vector<8x128xf32>
    %6 = arith.mulf %5, %0 : vector<8x128xf32>
    %cst_3 = arith.constant 5.000000e-01 : f32
    %7 = vector.broadcast %cst_3 : f32 to vector<8x128xf32>
    %8 = arith.mulf %7, %6 : vector<8x128xf32>
    %cst_4 = arith.constant 0.707106769 : f32
    %9 = vector.broadcast %cst_4 : f32 to vector<8x128xf32>
    %10 = arith.mulf %6, %9 : vector<8x128xf32>
    %cst_5 = arith.constant -4.000000e+00 : f32
    %cst_6 = arith.constant 4.000000e+00 : f32
    %11 = vector.broadcast %cst_5 : f32 to vector<8x128xf32>
    %12 = arith.maximumf %11, %10 : vector<8x128xf32>
    %13 = vector.broadcast %cst_6 : f32 to vector<8x128xf32>
    %14 = arith.minimumf %13, %12 : vector<8x128xf32>
    %15 = arith.mulf %14, %14 : vector<8x128xf32>
    %cst_7 = arith.constant -2.72614237E-10 : f32
    %16 = vector.broadcast %cst_7 : f32 to vector<8x128xf32>
    %17 = arith.mulf %16, %15 : vector<8x128xf32>
    %cst_8 = arith.constant 2.77068146E-8 : f32
    %18 = vector.broadcast %cst_8 : f32 to vector<8x128xf32>
    %19 = arith.addf %17, %18 : vector<8x128xf32>
    %20 = arith.mulf %19, %15 : vector<8x128xf32>
    %cst_9 = arith.constant -2.10102394E-6 : f32
    %21 = vector.broadcast %cst_9 : f32 to vector<8x128xf32>
    %22 = arith.addf %20, %21 : vector<8x128xf32>
    %23 = arith.mulf %22, %15 : vector<8x128xf32>
    %cst_10 = arith.constant -5.69250624E-5 : f32
    %24 = vector.broadcast %cst_10 : f32 to vector<8x128xf32>
    %25 = arith.addf %23, %24 : vector<8x128xf32>
    %26 = arith.mulf %25, %15 : vector<8x128xf32>
    %cst_11 = arith.constant -7.34990637E-4 : f32
    %27 = vector.broadcast %cst_11 : f32 to vector<8x128xf32>
    %28 = arith.addf %26, %27 : vector<8x128xf32>
    %29 = arith.mulf %28, %15 : vector<8x128xf32>
    %cst_12 = arith.constant -2.954600e-03 : f32
    %30 = vector.broadcast %cst_12 : f32 to vector<8x128xf32>
    %31 = arith.addf %29, %30 : vector<8x128xf32>
    %32 = arith.mulf %31, %15 : vector<8x128xf32>
    %cst_13 = arith.constant -0.0160960332 : f32
    %33 = vector.broadcast %cst_13 : f32 to vector<8x128xf32>
    %34 = arith.addf %32, %33 : vector<8x128xf32>
    %cst_14 = arith.constant -1.45660715E-5 : f32
    %35 = vector.broadcast %cst_14 : f32 to vector<8x128xf32>
    %36 = arith.mulf %35, %15 : vector<8x128xf32>
    %cst_15 = arith.constant -2.13374049E-4 : f32
    %37 = vector.broadcast %cst_15 : f32 to vector<8x128xf32>
    %38 = arith.addf %36, %37 : vector<8x128xf32>
    %39 = arith.mulf %38, %15 : vector<8x128xf32>
    %cst_16 = arith.constant -0.00168282702 : f32
    %40 = vector.broadcast %cst_16 : f32 to vector<8x128xf32>
    %41 = arith.addf %39, %40 : vector<8x128xf32>
    %42 = arith.mulf %41, %15 : vector<8x128xf32>
    %cst_17 = arith.constant -0.00737332925 : f32
    %43 = vector.broadcast %cst_17 : f32 to vector<8x128xf32>
    %44 = arith.addf %42, %43 : vector<8x128xf32>
    %45 = arith.mulf %44, %15 : vector<8x128xf32>
    %cst_18 = arith.constant -0.0142647391 : f32
    %46 = vector.broadcast %cst_18 : f32 to vector<8x128xf32>
    %47 = arith.addf %45, %46 : vector<8x128xf32>
    %48 = arith.mulf %14, %34 : vector<8x128xf32>
    %49 = arith.divf %48, %47 : vector<8x128xf32>
    %cst_19 = arith.constant 1.000000e+00 : f32
    %50 = vector.broadcast %cst_19 : f32 to vector<8x128xf32>
    %51 = arith.addf %50, %49 : vector<8x128xf32>
    %52 = arith.mulf %8, %51 : vector<8x128xf32>
    %cst_20 = arith.constant 1.000000e+00 : f32
    %53 = vector.broadcast %cst_20 : f32 to vector<8x128xf32>
    %54 = arith.addf %52, %53 : vector<8x128xf32>
    %cst_21 = arith.constant 5.000000e-01 : f32
    %55 = vector.broadcast %cst_21 : f32 to vector<8x128xf32>
    %56 = arith.mulf %55, %1 : vector<8x128xf32>
    %cst_22 = arith.constant 0.707106769 : f32
    %57 = vector.broadcast %cst_22 : f32 to vector<8x128xf32>
    %58 = arith.mulf %1, %57 : vector<8x128xf32>
    %cst_23 = arith.constant -4.000000e+00 : f32
    %cst_24 = arith.constant 4.000000e+00 : f32
    %59 = vector.broadcast %cst_23 : f32 to vector<8x128xf32>
    %60 = arith.maximumf %59, %58 : vector<8x128xf32>
    %61 = vector.broadcast %cst_24 : f32 to vector<8x128xf32>
    %62 = arith.minimumf %61, %60 : vector<8x128xf32>
    %63 = arith.mulf %62, %62 : vector<8x128xf32>
    %cst_25 = arith.constant -2.72614237E-10 : f32
    %64 = vector.broadcast %cst_25 : f32 to vector<8x128xf32>
    %65 = arith.mulf %64, %63 : vector<8x128xf32>
    %cst_26 = arith.constant 2.77068146E-8 : f32
    %66 = vector.broadcast %cst_26 : f32 to vector<8x128xf32>
    %67 = arith.addf %65, %66 : vector<8x128xf32>
    %68 = arith.mulf %67, %63 : vector<8x128xf32>
    %cst_27 = arith.constant -2.10102394E-6 : f32
    %69 = vector.broadcast %cst_27 : f32 to vector<8x128xf32>
    %70 = arith.addf %68, %69 : vector<8x128xf32>
    %71 = arith.mulf %70, %63 : vector<8x128xf32>
    %cst_28 = arith.constant -5.69250624E-5 : f32
    %72 = vector.broadcast %cst_28 : f32 to vector<8x128xf32>
    %73 = arith.addf %71, %72 : vector<8x128xf32>
    %74 = arith.mulf %73, %63 : vector<8x128xf32>
    %cst_29 = arith.constant -7.34990637E-4 : f32
    %75 = vector.broadcast %cst_29 : f32 to vector<8x128xf32>
    %76 = arith.addf %74, %75 : vector<8x128xf32>
    %77 = arith.mulf %76, %63 : vector<8x128xf32>
    %cst_30 = arith.constant -2.954600e-03 : f32
    %78 = vector.broadcast %cst_30 : f32 to vector<8x128xf32>
    %79 = arith.addf %77, %78 : vector<8x128xf32>
    %80 = arith.mulf %79, %63 : vector<8x128xf32>
    %cst_31 = arith.constant -0.0160960332 : f32
    %81 = vector.broadcast %cst_31 : f32 to vector<8x128xf32>
    %82 = arith.addf %80, %81 : vector<8x128xf32>
    %cst_32 = arith.constant -1.45660715E-5 : f32
    %83 = vector.broadcast %cst_32 : f32 to vector<8x128xf32>
    %84 = arith.mulf %83, %63 : vector<8x128xf32>
    %cst_33 = arith.constant -2.13374049E-4 : f32
    %85 = vector.broadcast %cst_33 : f32 to vector<8x128xf32>
    %86 = arith.addf %84, %85 : vector<8x128xf32>
    %87 = arith.mulf %86, %63 : vector<8x128xf32>
    %cst_34 = arith.constant -0.00168282702 : f32
    %88 = vector.broadcast %cst_34 : f32 to vector<8x128xf32>
    %89 = arith.addf %87, %88 : vector<8x128xf32>
    %90 = arith.mulf %89, %63 : vector<8x128xf32>
    %cst_35 = arith.constant -0.00737332925 : f32
    %91 = vector.broadcast %cst_35 : f32 to vector<8x128xf32>
    %92 = arith.addf %90, %91 : vector<8x128xf32>
    %93 = arith.mulf %92, %63 : vector<8x128xf32>
    %cst_36 = arith.constant -0.0142647391 : f32
    %94 = vector.broadcast %cst_36 : f32 to vector<8x128xf32>
    %95 = arith.addf %93, %94 : vector<8x128xf32>
    %96 = arith.mulf %62, %82 : vector<8x128xf32>
    %97 = arith.divf %96, %95 : vector<8x128xf32>
    %cst_37 = arith.constant 1.000000e+00 : f32
    %98 = vector.broadcast %cst_37 : f32 to vector<8x128xf32>
    %99 = arith.addf %98, %97 : vector<8x128xf32>
    %100 = arith.mulf %56, %99 : vector<8x128xf32>
    %cst_38 = arith.constant 1.000000e+00 : f32
    %101 = vector.broadcast %cst_38 : f32 to vector<8x128xf32>
    %102 = arith.addf %100, %101 : vector<8x128xf32>
    %103 = arith.mulf %54, %102 : vector<8x128xf32>
    %cst_39 = arith.constant dense<0.000000e+00> : vector<128xf32>
    %104 = vector.multi_reduction <add>, %103, %cst_39 [0] : vector<8x128xf32> to vector<128xf32>
    %105 = vector.shape_cast %104 : vector<128xf32> to vector<1x128xf32>
    %cst_40 = arith.constant 0.176776692 : f32
    %106 = vector.broadcast %cst_40 : f32 to vector<1x128xf32>
    %107 = arith.mulf %105, %106 : vector<1x128xf32>
    %108 = vector.broadcast %107 : vector<1x128xf32> to vector<8x128xf32>
    %109 = arith.mulf %108, %54 : vector<8x128xf32>
    %cst_41 = arith.constant dense<0xFF800000> : vector<128xf32>
    %110 = vector.multi_reduction <maximumf>, %109, %cst_41 [0] : vector<8x128xf32> to vector<128xf32>
    %111 = vector.shape_cast %110 : vector<128xf32> to vector<1x128xf32>
    %112 = vector.broadcast %111 : vector<1x128xf32> to vector<8x128xf32>
    %113 = arith.subf %109, %112 : vector<8x128xf32>
    %114 = math.exp %113 : vector<8x128xf32>
    %cst_42 = arith.constant dense<0.000000e+00> : vector<128xf32>
    %115 = vector.multi_reduction <add>, %114, %cst_42 [0] : vector<8x128xf32> to vector<128xf32>
    %116 = vector.shape_cast %115 : vector<128xf32> to vector<1x128xf32>
    %cst_43 = arith.constant 1.000000e+00 : f32
    %117 = vector.broadcast %cst_43 : f32 to vector<1x128xf32>
    %118 = arith.divf %117, %116 : vector<1x128xf32>
    %119 = vector.broadcast %118 : vector<1x128xf32> to vector<8x128xf32>
    %120 = arith.mulf %114, %119 : vector<8x128xf32>
    %121 = arith.mulf %120, %6 : vector<8x128xf32>
    %122 = arith.addf %121, %6 : vector<8x128xf32>
    %c0_44 = arith.constant 0 : index
    %c0_45 = arith.constant 0 : index
    %123 = vector.load %arg3[%c0_44, %c0_45] : memref<8x128xf32, #tpu.memory_space<vmem>>, vector<8x128xf32>
    tpu.vector_store %arg3[%c0_44, %c0_45], %122 {strides = array<i32>} : memref<8x128xf32, #tpu.memory_space<vmem>>, vector<8x128xf32>,
    return
  }
  func.func @transform_0(%arg0: i32) -> (i32, i32) {
    %c0_i32 = arith.constant 0 : i32
    %c0_i32_0 = arith.constant 0 : i32
    return %c0_i32, %arg0 : i32, i32
  }
  func.func @transform_1(%arg0: i32) -> (i32, i32) {
    %c0_i32 = arith.constant 0 : i32
    %c0_i32_0 = arith.constant 0 : i32
    return %c0_i32, %arg0 : i32, i32
  }
  func.func @transform_2(%arg0: i32) -> (i32, i32) {
    %c0_i32 = arith.constant 0 : i32
    %c0_i32_0 = arith.constant 0 : i32
    return %c0_i32, %arg0 : i32, i32
  }
}

module attributes {stable_mosaic.version = 11 : i64} {
  func.func @_self_attn_kernel(%arg0: i32, %arg1: memref<8x128xf32, #tpu.memory_space<vmem>>, %arg2: memref<8x128xf32, #tpu.memory_space<vmem>>, %arg3: memref<8x128xf32, #tpu.memory_space<vmem>>) attributes {dimension_semantics = [#tpu.dimension_semantics<parallel>], iteration_bounds = array<i64: 1>, scalar_prefetch = 0 : i64, scratch_operands = 0 : i64, tpu.core_type = #tpu.core_type<tc>, window_params = [{transform_indices = @transform_0, window_bounds = array<i64: 8, 128>}, {transform_indices = @transform_1, window_bounds = array<i64: 8, 128>}, {transform_indices = @transform_2, window_bounds = array<i64: 8, 128>}]} {
    %c0 = arith.constant 0 : index
    %c0_0 = arith.constant 0 : index
    %0 = vector.load %arg1[%c0, %c0_0] : memref<8x128xf32, #tpu.memory_space<vmem>>, vector<8x128xf32>
    %c0_1 = arith.constant 0 : index
    %c0_2 = arith.constant 0 : index
    %1 = vector.load %arg2[%c0_1, %c0_2] : memref<8x128xf32, #tpu.memory_space<vmem>>, vector<8x128xf32>
    %2 = arith.mulf %0, %1 : vector<8x128xf32>
    %cst = arith.constant dense<0.000000e+00> : vector<128xf32>
    %3 = vector.multi_reduction <add>, %2, %cst [0] : vector<8x128xf32> to vector<128xf32>
    %4 = vector.shape_cast %3 : vector<128xf32> to vector<1x128xf32>
    %5 = vector.broadcast %4 : vector<1x128xf32> to vector<8x128xf32>
    %6 = arith.mulf %5, %0 : vector<8x128xf32>
    %cst_3 = arith.constant 5.000000e-01 : f32
    %7 = vector.broadcast %cst_3 : f32 to vector<8x128xf32>
    %8 = arith.mulf %7, %0 : vector<8x128xf32>
    %cst_4 = arith.constant 0.707106769 : f32
    %9 = vector.broadcast %cst_4 : f32 to vector<8x128xf32>
    %10 = arith.mulf %0, %9 : vector<8x128xf32>
    %cst_5 = arith.constant -4.000000e+00 : f32
    %cst_6 = arith.constant 4.000000e+00 : f32
    %11 = vector.broadcast %cst_5 : f32 to vector<8x128xf32>
    %12 = arith.maximumf %11, %10 : vector<8x128xf32>
    %13 = vector.broadcast %cst_6 : f32 to vector<8x128xf32>
    %14 = arith.minimumf %13, %12 : vector<8x128xf32>
    %15 = arith.mulf %14, %14 : vector<8x128xf32>
    %cst_7 = arith.constant -2.72614237E-10 : f32
    %16 = vector.broadcast %cst_7 : f32 to vector<8x128xf32>
    %17 = arith.mulf %16, %15 : vector<8x128xf32>
    %cst_8 = arith.constant 2.77068146E-8 : f32
    %18 = vector.broadcast %cst_8 : f32 to vector<8x128xf32>
    %19 = arith.addf %17, %18 : vector<8x128xf32>
    %20 = arith.mulf %19, %15 : vector<8x128xf32>
    %cst_9 = arith.constant -2.10102394E-6 : f32
    %21 = vector.broadcast %cst_9 : f32 to vector<8x128xf32>
    %22 = arith.addf %20, %21 : vector<8x128xf32>
    %23 = arith.mulf %22, %15 : vector<8x128xf32>
    %cst_10 = arith.constant -5.69250624E-5 : f32
    %24 = vector.broadcast %cst_10 : f32 to vector<8x128xf32>
    %25 = arith.addf %23, %24 : vector<8x128xf32>
    %26 = arith.mulf %25, %15 : vector<8x128xf32>
    %cst_11 = arith.constant -7.34990637E-4 : f32
    %27 = vector.broadcast %cst_11 : f32 to vector<8x128xf32>
    %28 = arith.addf %26, %27 : vector<8x128xf32>
    %29 = arith.mulf %28, %15 : vector<8x128xf32>
    %cst_12 = arith.constant -2.954600e-03 : f32
    %30 = vector.broadcast %cst_12 : f32 to vector<8x128xf32>
    %31 = arith.addf %29, %30 : vector<8x128xf32>
    %32 = arith.mulf %31, %15 : vector<8x128xf32>
    %cst_13 = arith.constant -0.0160960332 : f32
    %33 = vector.broadcast %cst_13 : f32 to vector<8x128xf32>
    %34 = arith.addf %32, %33 : vector<8x128xf32>
    %cst_14 = arith.constant -1.45660715E-5 : f32
    %35 = vector.broadcast %cst_14 : f32 to vector<8x128xf32>
    %36 = arith.mulf %35, %15 : vector<8x128xf32>
    %cst_15 = arith.constant -2.13374049E-4 : f32
    %37 = vector.broadcast %cst_15 : f32 to vector<8x128xf32>
    %38 = arith.addf %36, %37 : vector<8x128xf32>
    %39 = arith.mulf %38, %15 : vector<8x128xf32>
    %cst_16 = arith.constant -0.00168282702 : f32
    %40 = vector.broadcast %cst_16 : f32 to vector<8x128xf32>
    %41 = arith.addf %39, %40 : vector<8x128xf32>
    %42 = arith.mulf %41, %15 : vector<8x128xf32>
    %cst_17 = arith.constant -0.00737332925 : f32
    %43 = vector.broadcast %cst_17 : f32 to vector<8x128xf32>
    %44 = arith.addf %42, %43 : vector<8x128xf32>
    %45 = arith.mulf %44, %15 : vector<8x128xf32>
    %cst_18 = arith.constant -0.0142647391 : f32
    %46 = vector.broadcast %cst_18 : f32 to vector<8x128xf32>
    %47 = arith.addf %45, %46 : vector<8x128xf32>
    %48 = arith.mulf %14, %34 : vector<8x128xf32>
    %49 = arith.divf %48, %47 : vector<8x128xf32>
    %cst_19 = arith.constant 1.000000e+00 : f32
    %50 = vector.broadcast %cst_19 : f32 to vector<8x128xf32>
    %51 = arith.addf %50, %49 : vector<8x128xf32>
    %52 = arith.mulf %8, %51 : vector<8x128xf32>
    %cst_20 = arith.constant 1.000000e+00 : f32
    %53 = vector.broadcast %cst_20 : f32 to vector<8x128xf32>
    %54 = arith.addf %52, %53 : vector<8x128xf32>
    %cst_21 = arith.constant 5.000000e-01 : f32
    %55 = vector.broadcast %cst_21 : f32 to vector<8x128xf32>
    %56 = arith.mulf %55, %1 : vector<8x128xf32>
    %cst_22 = arith.constant 0.707106769 : f32
    %57 = vector.broadcast %cst_22 : f32 to vector<8x128xf32>
    %58 = arith.mulf %1, %57 : vector<8x128xf32>
    %cst_23 = arith.constant -4.000000e+00 : f32
    %cst_24 = arith.constant 4.000000e+00 : f32
    %59 = vector.broadcast %cst_23 : f32 to vector<8x128xf32>
    %60 = arith.maximumf %59, %58 : vector<8x128xf32>
    %61 = vector.broadcast %cst_24 : f32 to vector<8x128xf32>
    %62 = arith.minimumf %61, %60 : vector<8x128xf32>
    %63 = arith.mulf %62, %62 : vector<8x128xf32>
    %cst_25 = arith.constant -2.72614237E-10 : f32
    %64 = vector.broadcast %cst_25 : f32 to vector<8x128xf32>
    %65 = arith.mulf %64, %63 : vector<8x128xf32>
    %cst_26 = arith.constant 2.77068146E-8 : f32
    %66 = vector.broadcast %cst_26 : f32 to vector<8x128xf32>
    %67 = arith.addf %65, %66 : vector<8x128xf32>
    %68 = arith.mulf %67, %63 : vector<8x128xf32>
    %cst_27 = arith.constant -2.10102394E-6 : f32
    %69 = vector.broadcast %cst_27 : f32 to vector<8x128xf32>
    %70 = arith.addf %68, %69 : vector<8x128xf32>
    %71 = arith.mulf %70, %63 : vector<8x128xf32>
    %cst_28 = arith.constant -5.69250624E-5 : f32
    %72 = vector.broadcast %cst_28 : f32 to vector<8x128xf32>
    %73 = arith.addf %71, %72 : vector<8x128xf32>
    %74 = arith.mulf %73, %63 : vector<8x128xf32>
    %cst_29 = arith.constant -7.34990637E-4 : f32
    %75 = vector.broadcast %cst_29 : f32 to vector<8x128xf32>
    %76 = arith.addf %74, %75 : vector<8x128xf32>
    %77 = arith.mulf %76, %63 : vector<8x128xf32>
    %cst_30 = arith.constant -2.954600e-03 : f32
    %78 = vector.broadcast %cst_30 : f32 to vector<8x128xf32>
    %79 = arith.addf %77, %78 : vector<8x128xf32>
    %80 = arith.mulf %79, %63 : vector<8x128xf32>
    %cst_31 = arith.constant -0.0160960332 : f32
    %81 = vector.broadcast %cst_31 : f32 to vector<8x128xf32>
    %82 = arith.addf %80, %81 : vector<8x128xf32>
    %cst_32 = arith.constant -1.45660715E-5 : f32
    %83 = vector.broadcast %cst_32 : f32 to vector<8x128xf32>
    %84 = arith.mulf %83, %63 : vector<8x128xf32>
    %cst_33 = arith.constant -2.13374049E-4 : f32
    %85 = vector.broadcast %cst_33 : f32 to vector<8x128xf32>
    %86 = arith.addf %84, %85 : vector<8x128xf32>
    %87 = arith.mulf %86, %63 : vector<8x128xf32>
    %cst_34 = arith.constant -0.00168282702 : f32
    %88 = vector.broadcast %cst_34 : f32 to vector<8x128xf32>
    %89 = arith.addf %87, %88 : vector<8x128xf32>
    %90 = arith.mulf %89, %63 : vector<8x128xf32>
    %cst_35 = arith.constant -0.00737332925 : f32
    %91 = vector.broadcast %cst_35 : f32 to vector<8x128xf32>
    %92 = arith.addf %90, %91 : vector<8x128xf32>
    %93 = arith.mulf %92, %63 : vector<8x128xf32>
    %cst_36 = arith.constant -0.0142647391 : f32
    %94 = vector.broadcast %cst_36 : f32 to vector<8x128xf32>
    %95 = arith.addf %93, %94 : vector<8x128xf32>
    %96 = arith.mulf %62, %82 : vector<8x128xf32>
    %97 = arith.divf %96, %95 : vector<8x128xf32>
    %cst_37 = arith.constant 1.000000e+00 : f32
    %98 = vector.broadcast %cst_37 : f32 to vector<8x128xf32>
    %99 = arith.addf %98, %97 : vector<8x128xf32>
    %100 = arith.mulf %56, %99 : vector<8x128xf32>
    %cst_38 = arith.constant 1.000000e+00 : f32
    %101 = vector.broadcast %cst_38 : f32 to vector<8x128xf32>
    %102 = arith.addf %100, %101 : vector<8x128xf32>
    %103 = arith.mulf %54, %102 : vector<8x128xf32>
    %cst_39 = arith.constant dense<0.000000e+00> : vector<128xf32>
    %104 = vector.multi_reduction <add>, %103, %cst_39 [0] : vector<8x128xf32> to vector<128xf32>
    %105 = vector.shape_cast %104 : vector<128xf32> to vector<1x128xf32>
    %cst_40 = arith.constant 0.176776692 : f32
    %106 = vector.broadcast %cst_40 : f32 to vector<1x128xf32>
    %107 = arith.mulf %105, %106 : vector<1x128xf32>
    %108 = vector.broadcast %107 : vector<1x128xf32> to vector<8x128xf32>
    %109 = arith.mulf %108, %54 : vector<8x128xf32>
    %cst_41 = arith.constant dense<0xFF800000> : vector<128xf32>
    %110 = vector.multi_reduction <maximumf>, %109, %cst_41 [0] : vector<8x128xf32> to vector<128xf32>
    %111 = vector.shape_cast %110 : vector<128xf32> to vector<1x128xf32>
    %112 = vector.broadcast %111 : vector<1x128xf32> to vector<8x128xf32>
    %113 = arith.subf %109, %112 : vector<8x128xf32>
    %114 = math.exp %113 : vector<8x128xf32>
    %cst_42 = arith.constant dense<0.000000e+00> : vector<128xf32>
    %115 = vector.multi_reduction <add>, %114, %cst_42 [0] : vector<8x128xf32> to vector<128xf32>
    %116 = vector.shape_cast %115 : vector<128xf32> to vector<1x128xf32>
    %cst_43 = arith.constant 1.000000e+00 : f32
    %117 = vector.broadcast %cst_43 : f32 to vector<1x128xf32>
    %118 = arith.divf %117, %116 : vector<1x128xf32>
    %119 = vector.broadcast %118 : vector<1x128xf32> to vector<8x128xf32>
    %120 = arith.mulf %114, %119 : vector<8x128xf32>
    %121 = arith.mulf %120, %6 : vector<8x128xf32>
    %122 = arith.addf %121, %0 : vector<8x128xf32>
    %c0_44 = arith.constant 0 : index
    %c0_45 = arith.constant 0 : index
    %123 = vector.load %arg3[%c0_44, %c0_45] : memref<8x128xf32, #tpu.memory_space<vmem>>, vector<8x128xf32>
    tpu.vector_store %arg3[%c0_44, %c0_45], %122 {strides = array<i32>} : memref<8x128xf32, #tpu.memory_space<vmem>>, vector<8x128xf32>,
    return
  }
  func.func @transform_0(%arg0: i32) -> (i32, i32) {
    %c0_i32 = arith.constant 0 : i32
    %c0_i32_0 = arith.constant 0 : i32
    return %c0_i32, %arg0 : i32, i32
  }
  func.func @transform_1(%arg0: i32) -> (i32, i32) {
    %c0_i32 = arith.constant 0 : i32
    %c0_i32_0 = arith.constant 0 : i32
    return %c0_i32, %arg0 : i32, i32
  }
  func.func @transform_2(%arg0: i32) -> (i32, i32) {
    %c0_i32 = arith.constant 0 : i32
    %c0_i32_0 = arith.constant 0 : i32
    return %c0_i32, %arg0 : i32, i32
  }
}

</mosaic_0001>

<llo_original>
// kernel: decoder_forward.4
$region0: #{decoder_forward.4}
  #allocation0 [shape = 'u32[]', space=smem, size = 0x4, offset = 0x4, fixed_abs, tag = 'smem constant byte address 0x4 - core index']
  #allocation1 [shape = 'u32[144,128]{1,0:T(1,128)}', space=vmem, size = 0x12000, scoped, tag = 'internal scratch']
  %s0 = inlined_call_operand.vmem [shape: f32[8,128], index: 0, kind: input, shape index: {}]
  %s1 = inlined_call_operand.vmem [shape: f32[8,128], index: 1, kind: input, shape index: {}]
  %s2 = inlined_call_operand.vmem [shape: f32[8,128], index: 2, kind: output, shape index: {}]
  %s3 = sld [smem:[#allocation0]]
  $region18: #{decoder_forward.4} parent=0
    _
  %s5 = ssub.s32 1, %s3
  %s6 = scalar_select 0, %s5, %s3
  // Predicated region
  $region2: #{decoder_forward.4} parent=0 // pred_check
    _
  $region3: #{decoder_forward.4} parent=0 // pred_check_branch
    %8 = sbr.rel (0) target = $region5
  $region4: #{decoder_forward.4} parent=0 // pred_region
    _
  $region5: #{decoder_forward.4} parent=0 // pred_fallthru
    _
  // Predicated region
  $region6: #{decoder_forward.4} parent=0 // pred_check
    _
  $region7: #{decoder_forward.4} parent=0 // pred_check_branch
    %10 = sbr.rel (0) target = $region9
  $region8: #{decoder_forward.4} parent=0 // pred_region
    _
  $region9: #{decoder_forward.4} parent=0 // pred_fallthru
    _
  %v11 = vld [vmem:[%s0] sm:$0xff]
  %v12 = vld [vmem:[%s1] sm:$0xff]
  %v13 = vmul.f32 %v11, %v12
  %v14 = vrot.slane %v13, 4
  %v15 = vadd.f32 %v13, %v14
  %v16 = vrot.slane %v15, 2
  %v17 = vadd.f32 %v15, %v16
  %v18 = vrot.slane %v17, 1
  %v19 = vadd.f32 %v17, %v18
  %v20 = vmul.f32 %v19, %v11
  %v21 = vmul.f32 %v20, 0.5
  %v22 = vmul.f32 %v20, 0.70710677
  %v23 = vmax.f32 %v22, -4.0
  %v24 = vmin.f32 %v23, 4.0
  %v25 = vmul.f32 %v24, %v24
  %v26 = vmul.f32 %v25, -2.7261424e-10
  %v27 = vadd.f32 %v26, 2.7706815e-08
  %v28 = vmul.f32 %v27, %v25
  %v29 = vadd.f32 %v28, -2.101024e-06
  %v30 = vmul.f32 %v29, %v25
  %v31 = vadd.f32 %v30, -5.6925062e-05
  %v32 = vmul.f32 %v31, %v25
  %v33 = vadd.f32 %v32, -0.00073499064
  %v34 = vmul.f32 %v33, %v25
  %v35 = vadd.f32 %v34, -0.0029546
  %v36 = vmul.f32 %v35, %v25
  %v37 = vadd.f32 %v36, -0.016096033
  %v38 = vmul.f32 %v25, -1.45660715e-05
  %v39 = vadd.f32 %v38, -0.00021337405
  %v40 = vmul.f32 %v39, %v25
  %v41 = vadd.f32 %v40, -0.001682827
  %v42 = vmul.f32 %v41, %v25
  %v43 = vadd.f32 %v42, -0.0073733293
  %v44 = vmul.f32 %v43, %v25
  %v45 = vadd.f32 %v44, -0.014264739
  %v46 = vmul.f32 %v24, %v37
  %v47 = vrcp.pop %v45
  %v48 = vmul.f32 %v46, %v47
  %v49 = vadd.f32 %v48, 1.0
  %v50 = vmul.f32 %v21, %v49
  %v51 = vadd.f32 %v50, 1.0
  %v52 = vmul.f32 %v12, 0.5
  %v53 = vmul.f32 %v12, 0.70710677
  %v54 = vmax.f32 %v53, -4.0
  %v55 = vmin.f32 %v54, 4.0
  %v56 = vmul.f32 %v55, %v55
  %v57 = vmul.f32 %v56, -2.7261424e-10
  %v58 = vadd.f32 %v57, 2.7706815e-08
  %v59 = vmul.f32 %v58, %v56
  %v60 = vadd.f32 %v59, -2.101024e-06
  %v61 = vmul.f32 %v60, %v56
  %v62 = vadd.f32 %v61, -5.6925062e-05
  %v63 = vmul.f32 %v62, %v56
  %v64 = vadd.f32 %v63, -0.00073499064
  %v65 = vmul.f32 %v64, %v56
  %v66 = vadd.f32 %v65, -0.0029546
  %v67 = vmul.f32 %v66, %v56
  %v68 = vadd.f32 %v67, -0.016096033
  %v69 = vmul.f32 %v56, -1.45660715e-05
  %v70 = vadd.f32 %v69, -0.00021337405
  %v71 = vmul.f32 %v70, %v56
  %v72 = vadd.f32 %v71, -0.001682827
  %v73 = vmul.f32 %v72, %v56
  %v74 = vadd.f32 %v73, -0.0073733293
  %v75 = vmul.f32 %v74, %v56
  %v76 = vadd.f32 %v75, -0.014264739
  %v77 = vmul.f32 %v55, %v68
  %v78 = vrcp.pop %v76
  %v79 = vmul.f32 %v77, %v78
  %v80 = vadd.f32 %v79, 1.0
  %v81 = vmul.f32 %v52, %v80
  %v82 = vadd.f32 %v81, 1.0
  %v83 = vmul.f32 %v51, %v82
  %v84 = vrot.slane %v83, 4
  %v85 = vadd.f32 %v83, %v84
  %v86 = vrot.slane %v85, 2
  %v87 = vadd.f32 %v85, %v86
  %v88 = vrot.slane %v87, 1
  %v89 = vadd.f32 %v87, %v88
  %v90 = vmul.f32 %v89, 0.17677669
  %v91 = vmul.f32 %v90, %v51
  %v92 = vrot.slane %v91, 4
  %v93 = vmax.f32 %v91, %v92
  %v94 = vrot.slane %v93, 2
  %v95 = vmax.f32 %v93, %v94
  %v96 = vrot.slane %v95, 1
  %v97 = vmax.f32 %v95, %v96
  %v98 = vsub.f32 %v91, %v97
  %v99 = vmul.f32 %v98, 1.442695
  %v100 = vpow.pop %v99
  %v101 = vrot.slane %v100, 4
  %v102 = vadd.f32 %v100, %v101
  %v103 = vrot.slane %v102, 2
  %v104 = vadd.f32 %v102, %v103
  %v105 = vrot.slane %v104, 1
  %v106 = vadd.f32 %v104, %v105
  %v107 = vrcp.pop %v106
  %v108 = vmul.f32 1.0, %v107
  %v109 = vmul.f32 %v100, %v108
  %v110 = vmul.f32 %v109, %v20
  %v111 = vadd.f32 %v110, %v20
  %112 = vst [vmem:[%s2] sm:$0xff] %v111
  // Predicated region
  $region10: #{decoder_forward.4} parent=0 // pred_check
    _
  $region11: #{decoder_forward.4} parent=0 // pred_check_branch
    %114 = sbr.rel (0) target = $region13
  $region12: #{decoder_forward.4} parent=0 // pred_region
    _
  $region13: #{decoder_forward.4} parent=0 // pred_fallthru
    _
  // Predicated region
  $region14: #{decoder_forward.4} parent=0 // pred_check
    _
  $region15: #{decoder_forward.4} parent=0 // pred_check_branch
    %116 = sbr.rel (0) target = $region17
  $region16: #{decoder_forward.4} parent=0 // pred_region
    _
  $region17: #{decoder_forward.4} parent=0 // pred_fallthru
    _

// kernel: decoder_forward.5
$region0: #{decoder_forward.5}
  #allocation0 [shape = 'u32[]', space=smem, size = 0x4, offset = 0x4, fixed_abs, tag = 'smem constant byte address 0x4 - core index']
  #allocation1 [shape = 'u32[144,128]{1,0:T(1,128)}', space=vmem, size = 0x12000, scoped, tag = 'internal scratch']
  %s0 = inlined_call_operand.vmem [shape: f32[8,128], index: 0, kind: input, shape index: {}]
  %s1 = inlined_call_operand.vmem [shape: f32[1,128], index: 1, kind: input, shape index: {}]
  %s2 = inlined_call_operand.vmem [shape: f32[1,128], index: 2, kind: input, shape index: {}]
  %s3 = inlined_call_operand.vmem [shape: f32[8,128], index: 3, kind: output, shape index: {}]
  %s4 = sld [smem:[#allocation0]]
  $region22: #{decoder_forward.5} parent=0
    _
  %s6 = ssub.s32 1, %s4
  %s7 = scalar_select 0, %s6, %s4
  // Predicated region
  $region2: #{decoder_forward.5} parent=0 // pred_check
    _
  $region3: #{decoder_forward.5} parent=0 // pred_check_branch
    %9 = sbr.rel (0) target = $region5
  $region4: #{decoder_forward.5} parent=0 // pred_region
    _
  $region5: #{decoder_forward.5} parent=0 // pred_fallthru
    _
  // Predicated region
  $region6: #{decoder_forward.5} parent=0 // pred_check
    _
  $region7: #{decoder_forward.5} parent=0 // pred_check_branch
    %11 = sbr.rel (0) target = $region9
  $region8: #{decoder_forward.5} parent=0 // pred_region
    _
  $region9: #{decoder_forward.5} parent=0 // pred_fallthru
    _
  // Predicated region
  $region10: #{decoder_forward.5} parent=0 // pred_check
    _
  $region11: #{decoder_forward.5} parent=0 // pred_check_branch
    %13 = sbr.rel (0) target = $region13
  $region12: #{decoder_forward.5} parent=0 // pred_region
    _
  $region13: #{decoder_forward.5} parent=0 // pred_fallthru
    _
  %v14 = vld [vmem:[%s0] sm:$0xff]
  %v15 = vmul.f32 %v14, 0.5
  %v16 = vmul.f32 %v14, 0.70710677
  %v17 = vmax.f32 %v16, -4.0
  %v18 = vmin.f32 %v17, 4.0
  %v19 = vmul.f32 %v18, %v18
  %v20 = vmul.f32 %v19, -2.7261424e-10
  %v21 = vadd.f32 %v20, 2.7706815e-08
  %v22 = vmul.f32 %v21, %v19
  %v23 = vadd.f32 %v22, -2.101024e-06
  %v24 = vmul.f32 %v23, %v19
  %v25 = vadd.f32 %v24, -5.6925062e-05
  %v26 = vmul.f32 %v25, %v19
  %v27 = vadd.f32 %v26, -0.00073499064
  %v28 = vmul.f32 %v27, %v19
  %v29 = vadd.f32 %v28, -0.0029546
  %v30 = vmul.f32 %v29, %v19
  %v31 = vadd.f32 %v30, -0.016096033
  %v32 = vmul.f32 %v19, -1.45660715e-05
  %v33 = vadd.f32 %v32, -0.00021337405
  %v34 = vmul.f32 %v33, %v19
  %v35 = vadd.f32 %v34, -0.001682827
  %v36 = vmul.f32 %v35, %v19
  %v37 = vadd.f32 %v36, -0.0073733293
  %v38 = vmul.f32 %v37, %v19
  %v39 = vadd.f32 %v38, -0.014264739
  %v40 = vmul.f32 %v18, %v31
  %v41 = vrcp.pop %v39
  %v42 = vmul.f32 %v40, %v41
  %v43 = vadd.f32 %v42, 1.0
  %v44 = vmul.f32 %v15, %v43
  %v45 = vadd.f32 %v44, 1.0
  %v46 = vld [vmem:[%s1] sm:$0x1]
  %v47 = vld [vmem:[%s2] sm:$0x1]
  %v49 = vlaneseq
  %v50 = vshrl.u32 %v49, 7
  %v51 = vsub.s32 0, %v50
  %v52 = vrot.slane %v46, %v51
  %v54 = vmul.f32 %v45, %v52
  %v55 = vrot.slane %v54, 4
  %v56 = vadd.f32 %v54, %v55
  %v57 = vrot.slane %v56, 2
  %v58 = vadd.f32 %v56, %v57
  %v59 = vrot.slane %v58, 1
  %v60 = vadd.f32 %v58, %v59
  %v61 = vmul.f32 %v60, 0.17677669
  %v62 = vmul.f32 %v61, %v45
  %v63 = vrot.slane %v62, 4
  %v64 = vmax.f32 %v62, %v63
  %v65 = vrot.slane %v64, 2
  %v66 = vmax.f32 %v64, %v65
  %v67 = vrot.slane %v66, 1
  %v68 = vmax.f32 %v66, %v67
  %v69 = vsub.f32 %v62, %v68
  %v70 = vmul.f32 %v69, 1.442695
  %v71 = vpow.pop %v70
  %v72 = vrot.slane %v71, 4
  %v73 = vadd.f32 %v71, %v72
  %v74 = vrot.slane %v73, 2
  %v75 = vadd.f32 %v73, %v74
  %v76 = vrot.slane %v75, 1
  %v77 = vadd.f32 %v75, %v76
  %v78 = vrcp.pop %v77
  %v79 = vmul.f32 1.0, %v78
  %v80 = vmul.f32 %v71, %v79
  %v82 = vlaneseq
  %v83 = vshrl.u32 %v82, 7
  %v84 = vsub.s32 0, %v83
  %v85 = vrot.slane %v47, %v84
  %v87 = vmul.f32 %v80, %v85
  %v88 = vadd.f32 %v87, %v14
  %89 = vst [vmem:[%s3] sm:$0xff] %v88
  // Predicated region
  $region14: #{decoder_forward.5} parent=0 // pred_check
    _
  $region15: #{decoder_forward.5} parent=0 // pred_check_branch
    %91 = sbr.rel (0) target = $region17
  $region16: #{decoder_forward.5} parent=0 // pred_region
    _
  $region17: #{decoder_forward.5} parent=0 // pred_fallthru
    _
  // Predicated region
  $region18: #{decoder_forward.5} parent=0 // pred_check
    _
  $region19: #{decoder_forward.5} parent=0 // pred_check_branch
    %93 = sbr.rel (0) target = $region21
  $region20: #{decoder_forward.5} parent=0 // pred_region
    _
  $region21: #{decoder_forward.5} parent=0 // pred_fallthru
    _

// kernel: decoder_forward.6
$region0: #{decoder_forward.6}
  #allocation0 [shape = 'u32[]', space=smem, size = 0x4, offset = 0x4, fixed_abs, tag = 'smem constant byte address 0x4 - core index']
  #allocation1 [shape = 'u32[144,128]{1,0:T(1,128)}', space=vmem, size = 0x12000, scoped, tag = 'internal scratch']
  %s0 = inlined_call_operand.vmem [shape: f32[8,128], index: 0, kind: input, shape index: {}]
  %s1 = inlined_call_operand.vmem [shape: f32[8,128], index: 1, kind: input, shape index: {}]
  %s2 = inlined_call_operand.vmem [shape: f32[8,128], index: 2, kind: output, shape index: {}]
  %s3 = sld [smem:[#allocation0]]
  $region18: #{decoder_forward.6} parent=0
    _
  %s5 = ssub.s32 1, %s3
  %s6 = scalar_select 0, %s5, %s3
  // Predicated region
  $region2: #{decoder_forward.6} parent=0 // pred_check
    _
  $region3: #{decoder_forward.6} parent=0 // pred_check_branch
    %8 = sbr.rel (0) target = $region5
  $region4: #{decoder_forward.6} parent=0 // pred_region
    _
  $region5: #{decoder_forward.6} parent=0 // pred_fallthru
    _
  // Predicated region
  $region6: #{decoder_forward.6} parent=0 // pred_check
    _
  $region7: #{decoder_forward.6} parent=0 // pred_check_branch
    %10 = sbr.rel (0) target = $region9
  $region8: #{decoder_forward.6} parent=0 // pred_region
    _
  $region9: #{decoder_forward.6} parent=0 // pred_fallthru
    _
  %v11 = vld [vmem:[%s0] sm:$0xff]
  %v12 = vld [vmem:[%s1] sm:$0xff]
  %v13 = vmul.f32 %v11, %v12
  %v14 = vrot.slane %v13, 4
  %v15 = vadd.f32 %v13, %v14
  %v16 = vrot.slane %v15, 2
  %v17 = vadd.f32 %v15, %v16
  %v18 = vrot.slane %v17, 1
  %v19 = vadd.f32 %v17, %v18
  %v20 = vmul.f32 %v19, %v11
  %v21 = vmul.f32 %v11, 0.5
  %v22 = vmul.f32 %v11, 0.70710677
  %v23 = vmax.f32 %v22, -4.0
  %v24 = vmin.f32 %v23, 4.0
  %v25 = vmul.f32 %v24, %v24
  %v26 = vmul.f32 %v25, -2.7261424e-10
  %v27 = vadd.f32 %v26, 2.7706815e-08
  %v28 = vmul.f32 %v27, %v25
  %v29 = vadd.f32 %v28, -2.101024e-06
  %v30 = vmul.f32 %v29, %v25
  %v31 = vadd.f32 %v30, -5.6925062e-05
  %v32 = vmul.f32 %v31, %v25
  %v33 = vadd.f32 %v32, -0.00073499064
  %v34 = vmul.f32 %v33, %v25
  %v35 = vadd.f32 %v34, -0.0029546
  %v36 = vmul.f32 %v35, %v25
  %v37 = vadd.f32 %v36, -0.016096033
  %v38 = vmul.f32 %v25, -1.45660715e-05
  %v39 = vadd.f32 %v38, -0.00021337405
  %v40 = vmul.f32 %v39, %v25
  %v41 = vadd.f32 %v40, -0.001682827
  %v42 = vmul.f32 %v41, %v25
  %v43 = vadd.f32 %v42, -0.0073733293
  %v44 = vmul.f32 %v43, %v25
  %v45 = vadd.f32 %v44, -0.014264739
  %v46 = vmul.f32 %v24, %v37
  %v47 = vrcp.pop %v45
  %v48 = vmul.f32 %v46, %v47
  %v49 = vadd.f32 %v48, 1.0
  %v50 = vmul.f32 %v21, %v49
  %v51 = vadd.f32 %v50, 1.0
  %v52 = vmul.f32 %v12, 0.5
  %v53 = vmul.f32 %v12, 0.70710677
  %v54 = vmax.f32 %v53, -4.0
  %v55 = vmin.f32 %v54, 4.0
  %v56 = vmul.f32 %v55, %v55
  %v57 = vmul.f32 %v56, -2.7261424e-10
  %v58 = vadd.f32 %v57, 2.7706815e-08
  %v59 = vmul.f32 %v58, %v56
  %v60 = vadd.f32 %v59, -2.101024e-06
  %v61 = vmul.f32 %v60, %v56
  %v62 = vadd.f32 %v61, -5.6925062e-05
  %v63 = vmul.f32 %v62, %v56
  %v64 = vadd.f32 %v63, -0.00073499064
  %v65 = vmul.f32 %v64, %v56
  %v66 = vadd.f32 %v65, -0.0029546
  %v67 = vmul.f32 %v66, %v56
  %v68 = vadd.f32 %v67, -0.016096033
  %v69 = vmul.f32 %v56, -1.45660715e-05
  %v70 = vadd.f32 %v69, -0.00021337405
  %v71 = vmul.f32 %v70, %v56
  %v72 = vadd.f32 %v71, -0.001682827
  %v73 = vmul.f32 %v72, %v56
  %v74 = vadd.f32 %v73, -0.0073733293
  %v75 = vmul.f32 %v74, %v56
  %v76 = vadd.f32 %v75, -0.014264739
  %v77 = vmul.f32 %v55, %v68
  %v78 = vrcp.pop %v76
  %v79 = vmul.f32 %v77, %v78
  %v80 = vadd.f32 %v79, 1.0
  %v81 = vmul.f32 %v52, %v80
  %v82 = vadd.f32 %v81, 1.0
  %v83 = vmul.f32 %v51, %v82
  %v84 = vrot.slane %v83, 4
  %v85 = vadd.f32 %v83, %v84
  %v86 = vrot.slane %v85, 2
  %v87 = vadd.f32 %v85, %v86
  %v88 = vrot.slane %v87, 1
  %v89 = vadd.f32 %v87, %v88
  %v90 = vmul.f32 %v89, 0.17677669
  %v91 = vmul.f32 %v90, %v51
  %v92 = vrot.slane %v91, 4
  %v93 = vmax.f32 %v91, %v92
  %v94 = vrot.slane %v93, 2
  %v95 = vmax.f32 %v93, %v94
  %v96 = vrot.slane %v95, 1
  %v97 = vmax.f32 %v95, %v96
  %v98 = vsub.f32 %v91, %v97
  %v99 = vmul.f32 %v98, 1.442695
  %v100 = vpow.pop %v99
  %v101 = vrot.slane %v100, 4
  %v102 = vadd.f32 %v100, %v101
  %v103 = vrot.slane %v102, 2
  %v104 = vadd.f32 %v102, %v103
  %v105 = vrot.slane %v104, 1
  %v106 = vadd.f32 %v104, %v105
  %v107 = vrcp.pop %v106
  %v108 = vmul.f32 1.0, %v107
  %v109 = vmul.f32 %v100, %v108
  %v110 = vmul.f32 %v109, %v20
  %v111 = vadd.f32 %v110, %v11
  %112 = vst [vmem:[%s2] sm:$0xff] %v111
  // Predicated region
  $region10: #{decoder_forward.6} parent=0 // pred_check
    _
  $region11: #{decoder_forward.6} parent=0 // pred_check_branch
    %114 = sbr.rel (0) target = $region13
  $region12: #{decoder_forward.6} parent=0 // pred_region
    _
  $region13: #{decoder_forward.6} parent=0 // pred_fallthru
    _
  // Predicated region
  $region14: #{decoder_forward.6} parent=0 // pred_check
    _
  $region15: #{decoder_forward.6} parent=0 // pred_check_branch
    %116 = sbr.rel (0) target = $region17
  $region16: #{decoder_forward.6} parent=0 // pred_region
    _
  $region17: #{decoder_forward.6} parent=0 // pred_fallthru
    _

</llo_original>
